<compile_context>
chip_gen: v7x
topology: tpu7x:2x2x1
jax: 0.10.0
libtpu: 0.0.40
codegen_flags: <defaults>
</compile_context>

<pallas_src>
import jax
import jax.numpy as jnp
from jax.experimental import pallas as pl
from jax.experimental.pallas import tpu as pltpu


def _round_up(x, m):
    return ((x + m - 1) // m) * m


def deepset_decoder_kernel(x_ref, w1_ref, b1_ref, w2_ref, b2_ref, o_ref):
    # x_ref:  (TB, N*D)  flattened sets (pooling folded into the matmul)
    # w1_ref: (N*D, H)   W1 replicated N times along K
    # b1_ref: (1, H)
    # w2_ref: (1, H)     second-layer weight row
    # b2_ref: (1, 1)     scalar bias in SMEM
    # o_ref:  (1, TB)    lane-dense output (batch on the lane axis)

    # Layer 1: set-sum + Linear fused into one lane-dense MXU contraction.
    h = jnp.dot(x_ref[...], w1_ref[...], preferred_element_type=jnp.float32)
    h = jnp.maximum(h + b1_ref[...], 0.0)                       # (TB, H)

    # Layer 2: contract over H; result is (1, TB) so the store is unmasked.
    y = jax.lax.dot_general(
        w2_ref[...], h,
        dimension_numbers=(((1,), (1,)), ((), ())),
        preferred_element_type=jnp.float32)                     # (1, TB)
    y = jnp.maximum(y + b2_ref[0, 0], 0.0)

    o_ref[...] = y.astype(o_ref.dtype)


def deepset_decoder(x, w1, b1, w2, b2, *, block_b=512):
    """x: (B, N, D) float32.  w1: (D, H), b1: (1, H), w2: (H, 1), b2: (1, 1).

    Returns (B, 1) float32, matching the PyTorch DeepSetDecoder forward."""
    B, N, D = x.shape
    H = w1.shape[1]
    K = N * D

    # Batch tile: multiple of 8 sublanes; multiple of 128 lanes whenever the
    # grid has more than one step (lane-dense output blocks).
    TB = min(_round_up(block_b, 128), _round_up(B, 8))
    B_pad = _round_up(B, TB)
    G = B_pad // TB

    # Fold the set-sum into the first matmul: x -> (B, N*D), W1 tiled N x on K.
    x_flat = x.reshape(B, K)
    if B_pad != B:
        x_flat = jnp.pad(x_flat, ((0, B_pad - B), (0, 0)))
    w1_rep = jnp.tile(w1, (N, 1))          # (N*D, H)
    b1_row = b1.reshape(1, H)
    w2_row = w2.reshape(1, H)
    b2_s = b2.reshape(1, 1)

    cost = pl.CostEstimate(
        flops=2 * B_pad * K * H + 2 * B_pad * H,
        transcendentals=0,
        bytes_accessed=4 * (B_pad * K + K * H + 2 * H + 1 + B_pad),
    )

    out = pl.pallas_call(
        deepset_decoder_kernel,
        out_shape=jax.ShapeDtypeStruct((1, B_pad), jnp.float32),
        grid=(G,),
        in_specs=[
            pl.BlockSpec((TB, K), lambda i: (i, 0)),               # x tile
            pl.BlockSpec((K, H), lambda i: (0, 0)),                # W1 (replicated)
            pl.BlockSpec((1, H), lambda i: (0, 0)),                # b1
            pl.BlockSpec((1, H), lambda i: (0, 0)),                # w2 row
            pl.BlockSpec(memory_space=pltpu.MemorySpace.SMEM),     # b2 scalar
        ],
        out_specs=pl.BlockSpec((1, TB), lambda i: (0, i)),
        compiler_params=pltpu.CompilerParams(
            dimension_semantics=("parallel",),
        ),
        cost_estimate=cost,
    )(x_flat, w1_rep, b1_row, w2_row, b2_s)

    return out[0, :B].reshape(B, 1)


def init_params(latent_dim=8, hidden_dim=16, seed=0):
    """Deterministic synthetic parameters matching nn.Linear shapes.

    Stored as (in, out) so the kernel computes x @ W (equivalent to
    PyTorch's x @ W^T with W of shape (out, in))."""
    k = jax.random.PRNGKey(seed)
    k1, k2, k3, k4 = jax.random.split(k, 4)
    w1 = jax.random.normal(k1, (latent_dim, hidden_dim), jnp.float32) * 0.1
    b1 = jax.random.normal(k2, (1, hidden_dim), jnp.float32) * 0.1
    w2 = jax.random.normal(k3, (hidden_dim, 1), jnp.float32) * 0.1
    b2 = jax.random.normal(k4, (1, 1), jnp.float32) * 0.1
    return w1, b1, w2, b2


def reference(x, w1, b1, w2, b2):
    pooled = jnp.sum(x, axis=1)
    h = jnp.maximum(pooled @ w1 + b1, 0.0)
    return jnp.maximum(h @ w2 + b2, 0.0)


if __name__ == "__main__":
    latent_dim, hidden_dim = 8, 16
    B, N = 2, 8  # batch, set size

    key = jax.random.PRNGKey(0)
    x = jax.random.normal(key, (B, N, latent_dim), jnp.float32)

    w1, b1, w2, b2 = init_params(latent_dim, hidden_dim)

    out = deepset_decoder(x, w1, b1, w2, b2)
    out = jax.block_until_ready(out)

    ref = reference(x, w1, b1, w2, b2)
    assert out.shape == (B, 1)
    assert jnp.allclose(out, ref, atol=1e-5, rtol=1e-5), (out, ref)

    print("KERNEL_OK")
</pallas_src>

<mosaic_0001>
module attributes {stable_mosaic.version = 11 : i64} {
  func.func @deepset_decoder_kernel(%arg0: i32, %arg1: memref<8x64xf32, #tpu.memory_space<vmem>>, %arg2: memref<64x16xf32, #tpu.memory_space<vmem>>, %arg3: memref<1x16xf32, #tpu.memory_space<vmem>>, %arg4: memref<1x16xf32, #tpu.memory_space<vmem>>, %arg5: memref<1x1xf32, #tpu.memory_space<smem>>, %arg6: memref<1x8xf32, #tpu.memory_space<vmem>>) attributes {dimension_semantics = [#tpu.dimension_semantics<parallel>], iteration_bounds = array<i64: 1>, scalar_prefetch = 0 : i64, scratch_operands = 0 : i64, tpu.core_type = #tpu.core_type<tc>, window_params = [{transform_indices = @transform_0, window_bounds = array<i64: 8, 64>}, {pipeline_mode = #tpu.pipeline_mode<synchronous>, transform_indices = @transform_1, window_bounds = array<i64: 64, 16>}, {pipeline_mode = #tpu.pipeline_mode<synchronous>, transform_indices = @transform_2, window_bounds = array<i64: 1, 16>}, {pipeline_mode = #tpu.pipeline_mode<synchronous>, transform_indices = @transform_3, window_bounds = array<i64: 1, 16>}, {transform_indices = @transform_4, window_bounds = array<i64: 1, 1>}, {transform_indices = @transform_5, window_bounds = array<i64: 1, 8>}]} {
    %c0 = arith.constant 0 : index
    %c0_0 = arith.constant 0 : index
    %0 = vector.load %arg1[%c0, %c0_0] : memref<8x64xf32, #tpu.memory_space<vmem>>, vector<8x64xf32>
    %c0_1 = arith.constant 0 : index
    %c0_2 = arith.constant 0 : index
    %1 = vector.load %arg2[%c0_1, %c0_2] : memref<64x16xf32, #tpu.memory_space<vmem>>, vector<64x16xf32>
    %cst = arith.constant dense<0.000000e+00> : vector<8x16xf32>
    %2 = tpu.matmul %0, %1, %cst {dimension_numbers = #tpu.dot_dimension_numbers<[1], [0], [0], [1], [0, 0, 1, 1], [], []>} : vector<8x64xf32>, vector<64x16xf32>, vector<8x16xf32> -> vector<8x16xf32>
    %c0_3 = arith.constant 0 : index
    %c0_4 = arith.constant 0 : index
    %3 = vector.load %arg3[%c0_3, %c0_4] : memref<1x16xf32, #tpu.memory_space<vmem>>, vector<1x16xf32>
    %4 = vector.broadcast %3 : vector<1x16xf32> to vector<8x16xf32>
    %5 = arith.addf %2, %4 : vector<8x16xf32>
    %cst_5 = arith.constant 0.000000e+00 : f32
    %6 = vector.broadcast %cst_5 : f32 to vector<8x16xf32>
    %7 = arith.maximumf %5, %6 : vector<8x16xf32>
    %c0_6 = arith.constant 0 : index
    %c0_7 = arith.constant 0 : index
    %8 = vector.load %arg4[%c0_6, %c0_7] : memref<1x16xf32, #tpu.memory_space<vmem>>, vector<1x16xf32>
    %cst_8 = arith.constant dense<0.000000e+00> : vector<1x8xf32>
    %9 = tpu.matmul %8, %7, %cst_8 {dimension_numbers = #tpu.dot_dimension_numbers<[1], [1], [0], [0], [0, 0, 1, 0], [], []>} : vector<1x16xf32>, vector<8x16xf32>, vector<1x8xf32> -> vector<1x8xf32>
    %c0_9 = arith.constant 0 : index
    %c0_10 = arith.constant 0 : index
    %10 = memref.load %arg5[%c0_9, %c0_10] : memref<1x1xf32, #tpu.memory_space<smem>>
    %11 = vector.broadcast %10 : f32 to vector<1x8xf32>
    %12 = arith.addf %9, %11 : vector<1x8xf32>
    %cst_11 = arith.constant 0.000000e+00 : f32
    %13 = vector.broadcast %cst_11 : f32 to vector<1x8xf32>
    %14 = arith.maximumf %12, %13 : vector<1x8xf32>
    %c0_12 = arith.constant 0 : index
    %c0_13 = arith.constant 0 : index
    %15 = vector.load %arg6[%c0_12, %c0_13] : memref<1x8xf32, #tpu.memory_space<vmem>>, vector<1x8xf32>
    tpu.vector_store %arg6[%c0_12, %c0_13], %14 {strides = array<i32>} : memref<1x8xf32, #tpu.memory_space<vmem>>, vector<1x8xf32>,
    return
  }
  func.func @transform_0(%arg0: i32) -> (i32, i32) {
    %c0_i32 = arith.constant 0 : i32
    %c0_i32_0 = arith.constant 0 : i32
    return %arg0, %c0_i32 : i32, i32
  }
  func.func @transform_1(%arg0: i32) -> (i32, i32) {
    %c0_i32 = arith.constant 0 : i32
    %c0_i32_0 = arith.constant 0 : i32
    %c0_i32_1 = arith.constant 0 : i32
    return %c0_i32, %c0_i32_0 : i32, i32
  }
  func.func @transform_2(%arg0: i32) -> (i32, i32) {
    %c0_i32 = arith.constant 0 : i32
    %c0_i32_0 = arith.constant 0 : i32
    %c0_i32_1 = arith.constant 0 : i32
    return %c0_i32, %c0_i32_0 : i32, i32
  }
  func.func @transform_3(%arg0: i32) -> (i32, i32) {
    %c0_i32 = arith.constant 0 : i32
    %c0_i32_0 = arith.constant 0 : i32
    %c0_i32_1 = arith.constant 0 : i32
    return %c0_i32, %c0_i32_0 : i32, i32
  }
  func.func @transform_4(%arg0: i32) -> (i32, i32) {
    %c0_i32 = arith.constant 0 : i32
    %c0_i32_0 = arith.constant 0 : i32
    %c0_i32_1 = arith.constant 0 : i32
    return %c0_i32, %c0_i32_0 : i32, i32
  }
  func.func @transform_5(%arg0: i32) -> (i32, i32) {
    %c0_i32 = arith.constant 0 : i32
    %c0_i32_0 = arith.constant 0 : i32
    return %c0_i32, %arg0 : i32, i32
  }
}

</mosaic_0001>

<llo_original>
// kernel: tpu_custom_call.1
$region0: #{tpu_custom_call.1}
  #allocation0 [shape = 'u32[]', space=smem, size = 0x4, offset = 0x4, fixed_abs, tag = 'smem constant byte address 0x4 - core index']
  #allocation1 [shape = 'u32[144,128]{1,0:T(1,128)}', space=vmem, size = 0x12000, scoped, tag = 'internal scratch']
  #allocation2 [shape = 'f32[1,1]{1,0:T(1,128)S(6)}', space=smem, size = 0x200, scoped, tag = 'scoped memory for tpu_custom_call.1']
  %s0 = inlined_call_operand.vmem [shape: f32[8,64], index: 0, kind: input, shape index: {}]
  %s1 = inlined_call_operand.vmem [shape: f32[64,16], index: 1, kind: input, shape index: {}]
  %s2 = inlined_call_operand.vmem [shape: f32[1,16], index: 2, kind: input, shape index: {}]
  %s3 = inlined_call_operand.vmem [shape: f32[1,16], index: 3, kind: input, shape index: {}]
  %s4 = inlined_call_operand.<no memory space> [shape: f32[1,1], index: 4, kind: input, shape index: {}]
  %s5 = inlined_call_operand.hbm [shape: f32[1,8], index: 5, kind: output, shape index: {}]
  %s6 = sld [smem:[#allocation0]]
  $region30: #{tpu_custom_call.1} parent=0
    _
  %s8 = ssub.s32 1, %s6
  %s9 = scalar_select 0, %s8, %s6
  %10 = sst [smem:[#allocation2]] %s4
  $region1: #{tpu_custom_call.1} parent=0
    #allocation3 [shape = 'u8[512]{0}', space=vmem, size = 0x400, scoped, tag = 'output window, operand 0, single buffered']
    #allocation4 [shape = 's32[1]{0}', space=sflag, size = 0x4, scoped, tag = 'scoped memory for tpu_custom_call.1']
    %11 = vsyncpa [#allocation4], 0
    // Predicated region
    $region2: #{tpu_custom_call.1} parent=1 // pred_check
      _
    $region3: #{tpu_custom_call.1} parent=1 // pred_check_branch
      %13 = sbr.rel (0) target = $region5
    $region4: #{tpu_custom_call.1} parent=1 // pred_region
      _
    $region5: #{tpu_custom_call.1} parent=1 // pred_fallthru
      _
    // Predicated region
    $region6: #{tpu_custom_call.1} parent=1 // pred_check
      _
    $region7: #{tpu_custom_call.1} parent=1 // pred_check_branch
      %15 = sbr.rel (0) target = $region9
    $region8: #{tpu_custom_call.1} parent=1 // pred_region
      _
    $region9: #{tpu_custom_call.1} parent=1 // pred_fallthru
      _
    // Predicated region
    $region10: #{tpu_custom_call.1} parent=1 // pred_check
      _
    $region11: #{tpu_custom_call.1} parent=1 // pred_check_branch
      %17 = sbr.rel (0) target = $region13
    $region12: #{tpu_custom_call.1} parent=1 // pred_region
      _
    $region13: #{tpu_custom_call.1} parent=1 // pred_fallthru
      _
    // Predicated region
    $region14: #{tpu_custom_call.1} parent=1 // pred_check
      _
    $region15: #{tpu_custom_call.1} parent=1 // pred_check_branch
      %19 = sbr.rel (0) target = $region17
    $region16: #{tpu_custom_call.1} parent=1 // pred_region
      _
    $region17: #{tpu_custom_call.1} parent=1 // pred_fallthru
      _
    // Predicated region
    $region18: #{tpu_custom_call.1} parent=1 // pred_check
      _
    $region19: #{tpu_custom_call.1} parent=1 // pred_check_branch
      %21 = sbr.rel (0) target = $region21
    $region20: #{tpu_custom_call.1} parent=1 // pred_region
      _
    $region21: #{tpu_custom_call.1} parent=1 // pred_fallthru
      _
    %v22 = vld [vmem:[%s0] sm:$0xff]
    %v23 = vld [vmem:[%s1] sm:$0xff]
    %v24 = vld [vmem:[%s1 + $0x8] sm:$0xff]
    %v25 = vld [vmem:[%s1 + $0x10] sm:$0xff]
    %v26 = vld [vmem:[%s1 + $0x18] sm:$0xff]
    %v27 = vld [vmem:[%s1 + $0x20] sm:$0xff]
    %v28 = vld [vmem:[%s1 + $0x28] sm:$0xff]
    %v29 = vld [vmem:[%s1 + $0x30] sm:$0xff]
    %v30 = vld [vmem:[%s1 + $0x38] sm:$0xff]
    %v31 = vld [vmem:[%s2] sm:$0x1]
    %v33 = vlaneseq
    %v34 = vshrl.u32 %v33, 7
    %v35 = vsub.s32 0, %v34
    %v36 = vrot.slane %v31, %v35
    %vm38 = vcmask 523264
    %v40 = vsel %vm38, %v22, 0
    %42 = vmatprep.subr.mxu0 0.0
    %43 = vmatpush1.msra.mxu0 %v23
    %44 = vmatprep.subr.mxu0 0.0
    %45 = vmatpush1.msra.mxu0 %v24
    %46 = vmatprep.subr.mxu0 0.0
    %47 = vmatpush1.msra.mxu0 %v25
    %48 = vmatprep.subr.mxu0 0.0
    %49 = vmatpush1.msra.mxu0 %v26
    %50 = vmatprep.subr.mxu0 0.0
    %51 = vmatpush1.msra.mxu0 %v27
    %52 = vmatprep.subr.mxu0 0.0
    %53 = vmatpush1.msra.mxu0 %v28
    %54 = vmatprep.subr.mxu0 0.0
    %55 = vmatpush1.msra.mxu0 %v29
    %56 = vmatprep.subr.mxu0 0.0
    %57 = vmatpush1.msra.mxu0 %v30
    %58 = vmatprep.subr.mxu0 0.0
    %59 = vmatpush1.msra.mxu0 0.0
    %60 = vmatprep.subr.mxu0 0.0
    %61 = vmatpush1.msra.mxu0 0.0
    %62 = vmatprep.subr.mxu0 0.0
    %63 = vmatpush1.msra.mxu0 0.0
    %64 = vmatprep.subr.mxu0 0.0
    %65 = vmatpush1.msra.mxu0 0.0
    %66 = vmatprep.subr.mxu0 0.0
    %67 = vmatpush1.msra.mxu0 0.0
    %68 = vmatprep.subr.mxu0 0.0
    %69 = vmatpush1.msra.mxu0 0.0
    %70 = vmatprep.subr.mxu0 0.0
    %71 = vmatpush1.msra.mxu0 0.0
    %72 = vmatprep.subr.mxu0 0.0
    %73 = vmatpush1.msra.mxu0 0.0
    %74 = vmatprep.subr.mxu0 0.0
    %75 = vmatpush1.msra.mxu0 0.0
    %76 = vmatprep.subr.mxu0 0.0
    %77 = vmatpush1.msra.mxu0 0.0
    %78 = vmatprep.subr.mxu0 0.0
    %79 = vmatpush1.msra.mxu0 0.0
    %80 = vmatprep.subr.mxu0 0.0
    %81 = vmatpush1.msra.mxu0 0.0
    %82 = vmatprep.subr.mxu0 0.0
    %83 = vmatpush1.msra.mxu0 0.0
    %84 = vmatprep.subr.mxu0 0.0
    %85 = vmatpush1.msra.mxu0 0.0
    %86 = vmatprep.subr.mxu0 0.0
    %87 = vmatpush1.msra.mxu0 0.0
    %88 = vmatprep.subr.mxu0 0.0
    %89 = vmatpush1.msra.mxu0 0.0
    %90 = vmatprep.subr.mxu0 0.0
    %91 = vmatpush1.msra.mxu0 0.0
    %92 = vmatprep.subr.mxu0 0.0
    %93 = vmatpush1.msra.mxu0 0.0
    %94 = vmatprep.subr.mxu0 0.0
    %95 = vmatpush1.msra.mxu0 0.0
    %96 = vmatprep.subr.mxu0 0.0
    %97 = vmatpush1.msra.mxu0 0.0
    %98 = vmatprep.subr.mxu0 0.0
    %99 = vmatpush1.msra.mxu0 0.0
    %100 = vmatprep.subr.mxu0 0.0
    %101 = vmatpush1.msra.mxu0 0.0
    %102 = vmatprep.subr.mxu0 0.0
    %103 = vmatpush1.msra.mxu0 0.0
    %104 = vmatprep.subr.mxu0 0.0
    %105 = vmatpush1.msra.mxu0 0.0
    %106 = vmatprep.mubr.f32.mxu0 0.0
    %107 = vmatmul.mubr.f32.gmra.mrb[0].mxu0 %v40
    %v108 = vpop.f32.mrb[0].mxu0
    %v109 = vadd.f32 %v36, %v108
    %v110 = vpop.f32.mrb[0].mxu0
    %111 = vdwg.mxu0
    %v112 = vmax.f32 %v109, 0.0
    %v113 = vld [vmem:[%s3] sm:$0x1]
    %s114 = sld [smem:[#allocation2]]
    %v115 = vstv %s114
    %vm116 = vcmask 130048
    %v118 = vsel %vm116, %v113, 0
    %v121 = vsel %vm116, %v112, 0
    %123 = vmatprep.subr.mxu0 0.0
    %124 = vmatpush1.xpose.msra.mxu0 %v121
    %125 = vmatprep.subr.mxu0 0.0
    %126 = vmatpush1.xpose.msra.mxu0 0.0
    %127 = vmatprep.subr.mxu0 0.0
    %128 = vmatpush1.xpose.msra.mxu0 0.0
    %129 = vmatprep.subr.mxu0 0.0
    %130 = vmatpush1.xpose.msra.mxu0 0.0
    %131 = vmatprep.subr.mxu0 0.0
    %132 = vmatpush1.xpose.msra.mxu0 0.0
    %133 = vmatprep.subr.mxu0 0.0
    %134 = vmatpush1.xpose.msra.mxu0 0.0
    %135 = vmatprep.subr.mxu0 0.0
    %136 = vmatpush1.xpose.msra.mxu0 0.0
    %137 = vmatprep.subr.mxu0 0.0
    %138 = vmatpush1.xpose.msra.mxu0 0.0
    %139 = vmatprep.subr.mxu0 0.0
    %140 = vmatpush1.xpose.msra.mxu0 0.0
    %141 = vmatprep.subr.mxu0 0.0
    %142 = vmatpush1.xpose.msra.mxu0 0.0
    %143 = vmatprep.subr.mxu0 0.0
    %144 = vmatpush1.xpose.msra.mxu0 0.0
    %145 = vmatprep.subr.mxu0 0.0
    %146 = vmatpush1.xpose.msra.mxu0 0.0
    %147 = vmatprep.subr.mxu0 0.0
    %148 = vmatpush1.xpose.msra.mxu0 0.0
    %149 = vmatprep.subr.mxu0 0.0
    %150 = vmatpush1.xpose.msra.mxu0 0.0
    %151 = vmatprep.subr.mxu0 0.0
    %152 = vmatpush1.xpose.msra.mxu0 0.0
    %153 = vmatprep.subr.mxu0 0.0
    %154 = vmatpush1.xpose.msra.mxu0 0.0
    %155 = vmatprep.subr.mxu0 0.0
    %156 = vmatpush1.xpose.msra.mxu0 0.0
    %157 = vmatprep.subr.mxu0 0.0
    %158 = vmatpush1.xpose.msra.mxu0 0.0
    %159 = vmatprep.subr.mxu0 0.0
    %160 = vmatpush1.xpose.msra.mxu0 0.0
    %161 = vmatprep.subr.mxu0 0.0
    %162 = vmatpush1.xpose.msra.mxu0 0.0
    %163 = vmatprep.subr.mxu0 0.0
    %164 = vmatpush1.xpose.msra.mxu0 0.0
    %165 = vmatprep.subr.mxu0 0.0
    %166 = vmatpush1.xpose.msra.mxu0 0.0
    %167 = vmatprep.subr.mxu0 0.0
    %168 = vmatpush1.xpose.msra.mxu0 0.0
    %169 = vmatprep.subr.mxu0 0.0
    %170 = vmatpush1.xpose.msra.mxu0 0.0
    %171 = vmatprep.subr.mxu0 0.0
    %172 = vmatpush1.xpose.msra.mxu0 0.0
    %173 = vmatprep.subr.mxu0 0.0
    %174 = vmatpush1.xpose.msra.mxu0 0.0
    %175 = vmatprep.subr.mxu0 0.0
    %176 = vmatpush1.xpose.msra.mxu0 0.0
    %177 = vmatprep.subr.mxu0 0.0
    %178 = vmatpush1.xpose.msra.mxu0 0.0
    %179 = vmatprep.subr.mxu0 0.0
    %180 = vmatpush1.xpose.msra.mxu0 0.0
    %181 = vmatprep.subr.mxu0 0.0
    %182 = vmatpush1.xpose.msra.mxu0 0.0
    %183 = vmatprep.subr.mxu0 0.0
    %184 = vmatpush1.xpose.msra.mxu0 0.0
    %185 = vmatprep.subr.mxu0 0.0
    %186 = vmatpush1.xpose.msra.mxu0 0.0
    %187 = vmatprep.mubr.f32.mxu0 0.0
    %188 = vmatmul.mubr.f32.gmra.mrb[0].mxu0 %v118
    %v189 = vpop.f32.mrb[0].mxu0
    %v190 = vadd.f32 %v115, %v189
    %v191 = vpop.f32.mrb[0].mxu0
    %192 = vdwg.mxu0
    %v193 = vmax.f32 %v190, 0.0
    %vm194 = vcmask 57344
    %195 = vst.msk [vmem:[#allocation3] sm:$0x1] %vm194, %v193
    // Predicated region
    $region22: #{tpu_custom_call.1} parent=1 // pred_check
      _
    $region23: #{tpu_custom_call.1} parent=1 // pred_check_branch
      %197 = sbr.rel (0) target = $region25
    $region24: #{tpu_custom_call.1} parent=1 // pred_region
      %s199 = ssub.s32 16, 16
      %200 = vsyncadd [#allocation4], %s199
      %s202 = sshll.u32 [#allocation3], 4
      %s203 = int_to_ptr.vmem [resolvable:$true] %s202
      %205 = dma.vmem_to_hbm [thread:$0]  %s203, 16, %s5, [#allocation4]
    $region25: #{tpu_custom_call.1} parent=1 // pred_fallthru
      _
    // Predicated region
    $region26: #{tpu_custom_call.1} parent=1 // pred_check
      _
    $region27: #{tpu_custom_call.1} parent=1 // pred_check_branch
      %207 = sbr.rel (0) target = $region29
    $region28: #{tpu_custom_call.1} parent=1 // pred_region
      %208 = dma.done [#allocation4], 16
    $region29: #{tpu_custom_call.1} parent=1 // pred_fallthru
      _
    %209 = vsyncpa [#allocation4], 1

</llo_original>
